<compile_context>
chip_gen: v6e
topology: v6e:2x2x1
jax: 0.10.0
libtpu: 0.0.40
codegen_flags: <defaults>
</compile_context>

<pallas_src>
import jax
import jax.numpy as jnp
from jax.experimental import pallas as pl
from jax.experimental.pallas import tpu as pltpu


def _attention_kernel(q_ref, m_ref, mask_ref, w_ref, b_ref,
                      out_ref, attn_ref, comb_ref):
    # Per-grid-step refs (batch-major; no in-kernel transposes needed):
    #   q_ref:    (Bb, Tt, H)   slice of output, batch-major
    #   m_ref:    (Bb, S,  H)   slice of memory, batch-major
    #   mask_ref: (Bb, Tt, S)   int8 (nonzero == masked)
    #   w_ref:    (2H, H)       = weight.T (stacked [W_ctx; W_q])
    #   b_ref:    (1, H)
    #   out_ref:  (Bb, Tt, H)
    #   attn_ref: (Bb, Tt, S)
    #   comb_ref: (Bb*Tt, 2H)   VMEM scratch for the merged epilogue matmul
    Bb, Tt, H = q_ref.shape
    S = m_ref.shape[1]

    q = q_ref[...]                                    # (Bb, Tt, H)
    m = m_ref[...]                                    # (Bb, S,  H)

    # scores[b,t,s] = sum_h q[b,t,h] * m[b,s,h]  (f32 accumulation on the MXU)
    scores = jnp.einsum("bth,bsh->bts", q, m,
                        preferred_element_type=jnp.float32)   # (Bb, Tt, S)
    # Additive mask: one multiply-add on the VPU instead of compare+select.
    # Note: fully-masked rows give a uniform softmax here (PyTorch gives NaN);
    # callers are expected to leave >=1 unmasked entry per row.
    scores = scores + mask_ref[...].astype(jnp.float32) * jnp.float32(-1e30)

    # Softmax over S in f32.
    mx = jnp.max(scores, axis=-1, keepdims=True)
    e = jnp.exp(scores - mx)
    denom = jnp.sum(e, axis=-1, keepdims=True)
    # TODO(synk): pl.reciprocal(approx=True) frees VPU slots via the EUP but
    # exceeds the 1e-5 validation tolerance; keep the exact reciprocal.
    attn = e * pl.reciprocal(denom, approx=False)             # (Bb, Tt, S)
    attn_ref[...] = attn.astype(attn_ref.dtype)

    # context[b,t,h] = sum_s attn[b,t,s] * m[b,s,h]
    ctx = jnp.einsum("bts,bsh->bth", attn.astype(m.dtype), m,
                     preferred_element_type=jnp.float32)      # (Bb, Tt, H)

    # Merged epilogue: out = tanh([ctx | q] @ weight.T + bias) as ONE matmul.
    comb_ref[:, :H] = ctx.reshape(Bb * Tt, H).astype(comb_ref.dtype)
    comb_ref[:, H:] = q.reshape(Bb * Tt, H).astype(comb_ref.dtype)
    lin = jnp.dot(comb_ref[...], w_ref[...],
                  preferred_element_type=jnp.float32)         # (Bb*Tt, H)
    out = jnp.tanh(lin + b_ref[...].astype(jnp.float32))
    out_ref[...] = out.reshape(Bb, Tt, H).astype(out_ref.dtype)


def _pick_tiles(B, T, S, H, in_bytes, out_bytes,
                budget_bytes=40 * 1024 * 1024):
    """Pick (Bb, Tt) so double-buffered pipeline blocks + in-kernel f32
    temporaries fit a v7x-safe VMEM budget; avoid degenerate length-1 grids."""

    def step_bytes(bb, tt):
        blocks = (bb * tt * H * in_bytes        # q tile
                  + bb * S * H * in_bytes       # memory tile
                  + bb * tt * S * 1             # int8 mask tile
                  + bb * tt * H * out_bytes     # out tile
                  + bb * tt * S * out_bytes)    # attn tile
        temps = (3 * bb * tt * S * 4            # scores / e / attn (f32)
                 + bb * tt * H * 4              # ctx (f32)
                 + bb * tt * 2 * H * in_bytes)  # combined scratch
        weights = 2 * H * H * 4 + H * 4
        return 2 * blocks + temps + 2 * weights  # x2 for double buffering

    # Tt must divide T and be a multiple of 8 (or equal T) for the (8,128) rule.
    t_cap = max(8, min(T, 256))
    t_cands = [d for d in range(T, 0, -1)
               if T % d == 0 and (d == T or d % 8 == 0) and d <= t_cap]
    if not t_cands:
        t_cands = [T]
    b_cands = [d for d in range(B, 0, -1) if B % d == 0]

    bb, tt = 1, t_cands[-1]
    done = False
    for cand_bb in b_cands:
        for cand_tt in t_cands:
            if step_bytes(cand_bb, cand_tt) <= budget_bytes:
                bb, tt = cand_bb, cand_tt
                done = True
                break
        if done:
            break

    # Megacore / pipelining: make sure there are >= 2 grid steps when possible.
    if (B // bb) * (T // tt) == 1:
        proper_b = [d for d in b_cands if d < bb]
        proper_t = [d for d in t_cands if d < tt]
        if proper_b:
            bb = proper_b[0]
        elif proper_t:
            tt = proper_t[0]

    return bb, tt, step_bytes(bb, tt)


@jax.jit
def attention_forward(output_tbh, memory_sbh, attn_mask_bts, weight, bias):
    """output: (T,B,H), memory: (S,B,H), attn_mask: (B,T,S) bool/int.
    weight: (H, 2H) [PyTorch nn.Linear(2H, H).weight], bias: (H,).
    Returns (out (T,B,H), attn (B,T,S))."""
    T, B, H = output_tbh.shape
    S = memory_sbh.shape[0]
    dt = output_tbh.dtype
    in_bytes = jnp.dtype(dt).itemsize
    out_bytes = in_bytes

    Bb, Tt, est = _pick_tiles(B, T, S, H, in_bytes, out_bytes)
    n_b, n_t = B // Bb, T // Tt

    # One-time batch-major relayout in XLA (pure HBM bandwidth, paid once,
    # instead of per-grid-step XLU relayouts inside the kernel).
    q_bth = jnp.transpose(output_tbh, (1, 0, 2))      # (B, T, H)
    m_bsh = jnp.transpose(memory_sbh, (1, 0, 2))      # (B, S, H)
    mask_i8 = attn_mask_bts.astype(jnp.int8)          # (B, T, S)
    w_stacked = jnp.transpose(weight)                 # (2H, H): [ctx|q] @ W.T
    bias2d = bias.reshape(1, H)

    # Scoped-VMEM limit sized to the actual double-buffered footprint
    # (clamped to stay v7x-safe).
    vmem_limit = int(min(max(int(est * 1.5) + (4 << 20), 24 << 20), 48 << 20))

    grid_spec = pltpu.PrefetchScalarGridSpec(
        num_scalar_prefetch=0,
        grid=(n_b, n_t),
        in_specs=[
            pl.BlockSpec((Bb, Tt, H), lambda b, t: (b, t, 0)),   # q (B,T,H)
            pl.BlockSpec((Bb, S, H), lambda b, t: (b, 0, 0)),    # m (B,S,H)
            pl.BlockSpec((Bb, Tt, S), lambda b, t: (b, t, 0)),   # mask
            pl.BlockSpec((2 * H, H), lambda b, t: (0, 0)),       # stacked W.T
            pl.BlockSpec((1, H), lambda b, t: (0, 0)),           # bias
        ],
        out_specs=[
            pl.BlockSpec((Bb, Tt, H), lambda b, t: (b, t, 0)),   # out (B,T,H)
            pl.BlockSpec((Bb, Tt, S), lambda b, t: (b, t, 0)),   # attn (B,T,S)
        ],
        scratch_shapes=[pltpu.VMEM((Bb * Tt, 2 * H), dt)],
    )

    out_bth, attn_bts = pl.pallas_call(
        _attention_kernel,
        grid_spec=grid_spec,
        out_shape=(
            jax.ShapeDtypeStruct((B, T, H), dt),
            jax.ShapeDtypeStruct((B, T, S), dt),
        ),
        compiler_params=pltpu.CompilerParams(
            dimension_semantics=("parallel", "parallel"),
            vmem_limit_bytes=vmem_limit),
    )(q_bth, m_bsh, mask_i8, w_stacked, bias2d)

    out_tbh = jnp.transpose(out_bth, (1, 0, 2))       # back to (T, B, H), once
    return out_tbh, attn_bts


def _reference(output_tbh, memory_sbh, attn_mask_bts, weight, bias):
    q = jnp.transpose(output_tbh, (1, 0, 2))           # (B, T, H)
    m = jnp.transpose(memory_sbh, (1, 0, 2))           # (B, S, H)
    scores = jnp.einsum("bth,bsh->bts", q, m)
    scores = jnp.where(attn_mask_bts, -jnp.inf, scores)
    attn = jax.nn.softmax(scores, axis=2)
    ctx = jnp.einsum("bts,bsh->bth", attn, m)
    combined = jnp.concatenate([ctx, q], axis=2)
    out = jnp.tanh(jnp.einsum("btk,hk->bth", combined, weight) + bias)
    return jnp.transpose(out, (1, 0, 2)), attn


if __name__ == "__main__":
    key = jax.random.PRNGKey(0)
    T, S, B, H = 8, 8, 2, 32

    k1, k2, k3, k4, k5 = jax.random.split(key, 5)
    output = jax.random.normal(k1, (T, B, H), dtype=jnp.float32)
    memory = jax.random.normal(k2, (S, B, H), dtype=jnp.float32)
    # Random boolean mask; keep at least one unmasked entry per row so the
    # softmax rows are well defined (matches PyTorch NaN behavior otherwise).
    mask = jax.random.bernoulli(k3, p=0.3, shape=(B, T, S))
    mask = mask.at[:, :, 0].set(False)

    # Deterministic parameter init for nn.Linear(dim*2, dim): W (H, 2H), b (H,)
    bound = 1.0 / jnp.sqrt(2.0 * H)
    weight = jax.random.uniform(k4, (H, 2 * H), minval=-bound, maxval=bound,
                                dtype=jnp.float32)
    bias = jax.random.uniform(k5, (H,), minval=-bound, maxval=bound,
                              dtype=jnp.float32)

    out, attn = attention_forward(output, memory, mask, weight, bias)
    out = jax.block_until_ready(out)
    attn = jax.block_until_ready(attn)

    ref_out, ref_attn = _reference(output, memory, mask, weight, bias)
    assert out.shape == (T, B, H) and attn.shape == (B, T, S)
    assert jnp.allclose(out, ref_out, atol=1e-5, rtol=1e-5)
    assert jnp.allclose(attn, ref_attn, atol=1e-5, rtol=1e-5)
    print("KERNEL_OK")
</pallas_src>

<mosaic_0001>
module attributes {stable_mosaic.version = 11 : i64} {
  func.func @_attention_kernel(%arg0: i32, %arg1: i32, %arg2: memref<1x8x32xf32, #tpu.memory_space<vmem>>, %arg3: memref<1x8x32xf32, #tpu.memory_space<vmem>>, %arg4: memref<1x8x8xi8, #tpu.memory_space<vmem>>, %arg5: memref<64x32xf32, #tpu.memory_space<vmem>>, %arg6: memref<1x32xf32, #tpu.memory_space<vmem>>, %arg7: memref<1x8x32xf32, #tpu.memory_space<vmem>>, %arg8: memref<1x8x8xf32, #tpu.memory_space<vmem>>, %arg9: memref<8x64xf32, #tpu.memory_space<vmem>>) attributes {dimension_semantics = [#tpu.dimension_semantics<parallel>, #tpu.dimension_semantics<parallel>], iteration_bounds = array<i64: 2, 1>, scalar_prefetch = 0 : i64, scratch_operands = 1 : i64, tpu.core_type = #tpu.core_type<tc>, window_params = [{transform_indices = @transform_0, window_bounds = array<i64: 1, 8, 32>}, {transform_indices = @transform_1, window_bounds = array<i64: 1, 8, 32>}, {transform_indices = @transform_2, window_bounds = array<i64: 1, 8, 8>}, {pipeline_mode = #tpu.pipeline_mode<synchronous>, transform_indices = @transform_3, window_bounds = array<i64: 64, 32>}, {pipeline_mode = #tpu.pipeline_mode<synchronous>, transform_indices = @transform_4, window_bounds = array<i64: 1, 32>}, {transform_indices = @transform_5, window_bounds = array<i64: 1, 8, 32>}, {transform_indices = @transform_6, window_bounds = array<i64: 1, 8, 8>}]} {
    %c0 = arith.constant 0 : index
    %c0_0 = arith.constant 0 : index
    %c0_1 = arith.constant 0 : index
    %0 = vector.load %arg2[%c0, %c0_0, %c0_1] : memref<1x8x32xf32, #tpu.memory_space<vmem>>, vector<1x8x32xf32>
    %c0_2 = arith.constant 0 : index
    %c0_3 = arith.constant 0 : index
    %c0_4 = arith.constant 0 : index
    %1 = vector.load %arg3[%c0_2, %c0_3, %c0_4] : memref<1x8x32xf32, #tpu.memory_space<vmem>>, vector<1x8x32xf32>
    "tpu.trace_start"() <{level = 10 : i32, message = "bth,bsh->bts"}> : () -> ()
    %cst = arith.constant dense<0.000000e+00> : vector<1x8x8xf32>
    %2 = tpu.matmul %0, %1, %cst {dimension_numbers = #tpu.dot_dimension_numbers<[2], [2], [1], [1], [0, 0, 0, 1, 1, 1], [0], [0]>} : vector<1x8x32xf32>, vector<1x8x32xf32>, vector<1x8x8xf32> -> vector<1x8x8xf32>
    "tpu.trace_stop"() : () -> ()
    %c0_5 = arith.constant 0 : index
    %c0_6 = arith.constant 0 : index
    %c0_7 = arith.constant 0 : index
    %3 = vector.load %arg4[%c0_5, %c0_6, %c0_7] : memref<1x8x8xi8, #tpu.memory_space<vmem>>, vector<1x8x8xi8>
    %4 = arith.sitofp %3 : vector<1x8x8xi8> to vector<1x8x8xf32>
    %cst_8 = arith.constant -1.000000e+30 : f32
    %5 = vector.broadcast %cst_8 : f32 to vector<1x8x8xf32>
    %6 = arith.mulf %4, %5 : vector<1x8x8xf32>
    %7 = arith.addf %2, %6 : vector<1x8x8xf32>
    %cst_9 = arith.constant dense<0xFF800000> : vector<1x8xf32>
    %8 = vector.multi_reduction <maximumf>, %7, %cst_9 [2] : vector<1x8x8xf32> to vector<1x8xf32>
    %9 = vector.shape_cast %8 : vector<1x8xf32> to vector<1x8x1xf32>
    %10 = vector.broadcast %9 : vector<1x8x1xf32> to vector<1x8x8xf32>
    %11 = arith.subf %7, %10 : vector<1x8x8xf32>
    %12 = math.exp %11 : vector<1x8x8xf32>
    %cst_10 = arith.constant dense<0.000000e+00> : vector<1x8xf32>
    %13 = vector.multi_reduction <add>, %12, %cst_10 [2] : vector<1x8x8xf32> to vector<1x8xf32>
    %14 = vector.shape_cast %13 : vector<1x8xf32> to vector<1x8x1xf32>
    %15 = tpu.reciprocal %14 : vector<1x8x1xf32> -> vector<1x8x1xf32>
    %16 = vector.broadcast %15 : vector<1x8x1xf32> to vector<1x8x8xf32>
    %17 = arith.mulf %12, %16 : vector<1x8x8xf32>
    %c0_11 = arith.constant 0 : index
    %c0_12 = arith.constant 0 : index
    %c0_13 = arith.constant 0 : index
    %18 = vector.load %arg8[%c0_11, %c0_12, %c0_13] : memref<1x8x8xf32, #tpu.memory_space<vmem>>, vector<1x8x8xf32>
    tpu.vector_store %arg8[%c0_11, %c0_12, %c0_13], %17 {strides = array<i32>} : memref<1x8x8xf32, #tpu.memory_space<vmem>>, vector<1x8x8xf32>,
    "tpu.trace_start"() <{level = 10 : i32, message = "bts,bsh->bth"}> : () -> ()
    %cst_14 = arith.constant dense<0.000000e+00> : vector<1x8x32xf32>
    %19 = tpu.matmul %17, %1, %cst_14 {dimension_numbers = #tpu.dot_dimension_numbers<[2], [1], [1], [2], [0, 0, 0, 1, 1, 2], [0], [0]>} : vector<1x8x8xf32>, vector<1x8x32xf32>, vector<1x8x32xf32> -> vector<1x8x32xf32>
    "tpu.trace_stop"() : () -> ()
    %20 = vector.shape_cast %19 : vector<1x8x32xf32> to vector<8x32xf32>
    %c0_15 = arith.constant 0 : index
    %c0_16 = arith.constant 0 : index
    %21 = vector.load %arg9[%c0_15, %c0_16] : memref<8x64xf32, #tpu.memory_space<vmem>>, vector<8x32xf32>
    tpu.vector_store %arg9[%c0_15, %c0_16], %20 {strides = array<i32>} : memref<8x64xf32, #tpu.memory_space<vmem>>, vector<8x32xf32>,
    %22 = vector.shape_cast %0 : vector<1x8x32xf32> to vector<8x32xf32>
    %c0_17 = arith.constant 0 : index
    %c32 = arith.constant 32 : index
    %23 = vector.load %arg9[%c0_17, %c32] : memref<8x64xf32, #tpu.memory_space<vmem>>, vector<8x32xf32>
    tpu.vector_store %arg9[%c0_17, %c32], %22 {strides = array<i32>} : memref<8x64xf32, #tpu.memory_space<vmem>>, vector<8x32xf32>,
    %c0_18 = arith.constant 0 : index
    %c0_19 = arith.constant 0 : index
    %24 = vector.load %arg9[%c0_18, %c0_19] : memref<8x64xf32, #tpu.memory_space<vmem>>, vector<8x64xf32>
    %c0_20 = arith.constant 0 : index
    %c0_21 = arith.constant 0 : index
    %25 = vector.load %arg5[%c0_20, %c0_21] : memref<64x32xf32, #tpu.memory_space<vmem>>, vector<64x32xf32>
    %cst_22 = arith.constant dense<0.000000e+00> : vector<8x32xf32>
    %26 = tpu.matmul %24, %25, %cst_22 {dimension_numbers = #tpu.dot_dimension_numbers<[1], [0], [0], [1], [0, 0, 1, 1], [], []>} : vector<8x64xf32>, vector<64x32xf32>, vector<8x32xf32> -> vector<8x32xf32>
    %c0_23 = arith.constant 0 : index
    %c0_24 = arith.constant 0 : index
    %27 = vector.load %arg6[%c0_23, %c0_24] : memref<1x32xf32, #tpu.memory_space<vmem>>, vector<1x32xf32>
    %28 = vector.broadcast %27 : vector<1x32xf32> to vector<8x32xf32>
    %29 = arith.addf %26, %28 : vector<8x32xf32>
    %30 = math.tanh %29 : vector<8x32xf32>
    %31 = vector.shape_cast %30 : vector<8x32xf32> to vector<1x8x32xf32>
    %c0_25 = arith.constant 0 : index
    %c0_26 = arith.constant 0 : index
    %c0_27 = arith.constant 0 : index
    %32 = vector.load %arg7[%c0_25, %c0_26, %c0_27] : memref<1x8x32xf32, #tpu.memory_space<vmem>>, vector<1x8x32xf32>
    tpu.vector_store %arg7[%c0_25, %c0_26, %c0_27], %31 {strides = array<i32>} : memref<1x8x32xf32, #tpu.memory_space<vmem>>, vector<1x8x32xf32>,
    return
  }
  func.func @transform_0(%arg0: i32, %arg1: i32) -> (i32, i32, i32) {
    %c0_i32 = arith.constant 0 : i32
    %c0_i32_0 = arith.constant 0 : i32
    return %arg0, %arg1, %c0_i32 : i32, i32, i32
  }
  func.func @transform_1(%arg0: i32, %arg1: i32) -> (i32, i32, i32) {
    %c0_i32 = arith.constant 0 : i32
    %c0_i32_0 = arith.constant 0 : i32
    %c0_i32_1 = arith.constant 0 : i32
    return %arg0, %c0_i32, %c0_i32_0 : i32, i32, i32
  }
  func.func @transform_2(%arg0: i32, %arg1: i32) -> (i32, i32, i32) {
    %c0_i32 = arith.constant 0 : i32
    %c0_i32_0 = arith.constant 0 : i32
    return %arg0, %arg1, %c0_i32 : i32, i32, i32
  }
  func.func @transform_3(%arg0: i32, %arg1: i32) -> (i32, i32) {
    %c0_i32 = arith.constant 0 : i32
    %c0_i32_0 = arith.constant 0 : i32
    %c0_i32_1 = arith.constant 0 : i32
    return %c0_i32, %c0_i32_0 : i32, i32
  }
  func.func @transform_4(%arg0: i32, %arg1: i32) -> (i32, i32) {
    %c0_i32 = arith.constant 0 : i32
    %c0_i32_0 = arith.constant 0 : i32
    %c0_i32_1 = arith.constant 0 : i32
    return %c0_i32, %c0_i32_0 : i32, i32
  }
  func.func @transform_5(%arg0: i32, %arg1: i32) -> (i32, i32, i32) {
    %c0_i32 = arith.constant 0 : i32
    %c0_i32_0 = arith.constant 0 : i32
    return %arg0, %arg1, %c0_i32 : i32, i32, i32
  }
  func.func @transform_6(%arg0: i32, %arg1: i32) -> (i32, i32, i32) {
    %c0_i32 = arith.constant 0 : i32
    %c0_i32_0 = arith.constant 0 : i32
    return %arg0, %arg1, %c0_i32 : i32, i32, i32
  }
}

</mosaic_0001>

<llo_original>
// kernel: attention_forward.1
$region0: #{attention_forward.1}
  #allocation0 [shape = 'u32[]', space=smem, size = 0x4, offset = 0x4, fixed_abs, tag = 'smem constant byte address 0x4 - core index']
  #allocation1 [shape = 'u32[144,128]{1,0:T(1,128)}', space=vmem, size = 0x12000, scoped, tag = 'internal scratch']
  #allocation2 [shape = 'f32[8,64]{1,0:T(8,128)}', space=vmem, size = 0x1000, scoped, tag = 'scratch operand']
  %s0 = inlined_call_operand.vmem [shape: f32[2,8,32], index: 0, kind: input, shape index: {}]
  %s1 = inlined_call_operand.vmem [shape: f32[2,8,32], index: 1, kind: input, shape index: {}]
  %s2 = inlined_call_operand.vmem [shape: s8[2,8,8], index: 2, kind: input, shape index: {}]
  %s3 = inlined_call_operand.vmem [shape: f32[64,32], index: 3, kind: input, shape index: {}]
  %s4 = inlined_call_operand.vmem [shape: f32[1,32], index: 4, kind: input, shape index: {}]
  %s5 = inlined_call_operand.vmem [shape: f32[2,8,32], index: 5, kind: output, shape index: {0}]
  %s6 = inlined_call_operand.hbm [shape: f32[2,8,8], index: 6, kind: output, shape index: {1}]
  %7 = xla_tuple %s5, %s6
  %s8 = sld [smem:[#allocation0]]
  $region61: #{attention_forward.1} parent=0
    _
  %s10 = ssub.s32 1, %s8
  %s11 = scalar_select 0, %s10, %s8
  $region1: #{attention_forward.1} parent=0
    #allocation3 [shape = 'u8[8192]{0}', space=vmem, size = 0x2000, scoped, tag = 'output window, operand 1']
    #allocation4 [shape = 's32[2]{0}', space=sflag, size = 0x8, scoped, tag = 'scoped memory for attention_forward.1']
    %12 = vsyncpa [#allocation4], 0
    %s13 = scalar_lea.sflag [#allocation4], 1
    %14 = vsyncpa %s13, 0
    loop: start=0, step=1, limit=4
    $region2: #{attention_forward.1} parent=1 // loop_pre_header
      _
    $region3: #{attention_forward.1} parent=1 // loop_header
      %s16 = sphi 0, %s20
      %p17 = scmp.ge.s32.totalorder %s16, 4
      %s23 = sphi 0, %s35
      %s24 = sphi 0, %s31
      %s25 = sphi 0, %s23
      %s26 = sphi 0, %s24
      %s27 = sphi 0, %s25
      %s28 = sphi 0, %s26
      %s40 = sphi 0, %s42
      %s43 = sphi 0, %s40
      %s44 = sphi 0, %s43
      %s60 = sphi 0, %s44
      %s66 = sphi 0, %s68
      %s69 = sphi 0, %s66
      %s70 = sphi 0, %s69
      %s86 = sphi 0, %s70
      %s94 = sphi 0, %s96
      %s97 = sphi 0, %s94
      %s98 = sphi 0, %s97
      %s114 = sphi 0, %s98
      %s118 = sphi 0, %s118
      %s120 = sphi 0, %s118
      %s121 = sphi 0, %s120
      %s135 = sphi 0, %s121
      %s139 = sphi 0, %s139
      %s141 = sphi 0, %s139
      %s142 = sphi 0, %s141
      %s156 = sphi 0, %s142
      %s164 = sphi 0, %s166
      %s167 = sphi 0, %s164
      %s168 = sphi 0, %s167
      %s184 = sphi 0, %s168
      %s192 = sphi 0, %s194
      %s195 = sphi 0, %s192
      %s196 = sphi 0, %s195
      %s212 = sphi 0, %s196
    $region4: #{attention_forward.1} parent=1 // loop_header_branch
      %19 = sbr.rel (%p17) target = $region8
    $region5: #{attention_forward.1} parent=1 // loop_body
      %s21 = ssub.s32 %s16, 1
      %s22 = ssub.s32 %s16, 2
      %s29 = sadd.s32 1, %s24
      %p30 = scmp.ge.s32.totalorder %s29, 1
      %s31 = scalar_select %p30, 0, %s29
      %s32 = sadd.s32 1, %s23
      %s33 = scalar_select %p30, %s32, %s23
      %p34 = scmp.ge.s32.totalorder %s33, 2
      %s35 = scalar_select %p34, 0, %s33
      %s36 = ssub.s32 %s23, %s35
      %s37 = ssub.s32 %s24, %s31
      %s38 = sor.u32 %s36, %s37
      %p39 = scmp.eq.s32.totalorder %s38, 0
      %s41 = sadd.s32 %s40, 1
      %s42 = scalar_select %p39, %s40, %s41
      %p45 = pneg %p39
      %p46 = scmp.eq.s32.totalorder %s16, 1
      %p47 = por %p45, %p46
      %p48 = scmp.ne.s32.totalorder %s40, %s43
      %p49 = scmp.eq.s32.totalorder %s16, 0
      %p50 = por %p48, %p49
      %p51 = scmp.ne.s32.totalorder %s40, %s43
      %p52 = scmp.eq.s32.totalorder %s21, 1
      %p53 = por %p51, %p52
      %p54 = scmp.ne.s32.totalorder %s43, %s44
      %p55 = scmp.eq.s32.totalorder %s21, 0
      %p56 = por %p54, %p55
      %p57 = scmp.ne.s32.totalorder %s43, %s44
      %p58 = scmp.eq.s32.totalorder %s22, 1
      %p59 = por %p57, %p58
      %p61 = scmp.ne.s32.totalorder %s44, %s60
      %p62 = scmp.eq.s32.totalorder %s22, 0
      %p63 = por %p61, %p62
      %s64 = ssub.s32 %s23, %s35
      %p65 = scmp.eq.s32.totalorder %s64, 0
      %s67 = sadd.s32 %s66, 1
      %s68 = scalar_select %p65, %s66, %s67
      %p71 = pneg %p65
      %p72 = scmp.eq.s32.totalorder %s16, 1
      %p73 = por %p71, %p72
      %p74 = scmp.ne.s32.totalorder %s66, %s69
      %p75 = scmp.eq.s32.totalorder %s16, 0
      %p76 = por %p74, %p75
      %p77 = scmp.ne.s32.totalorder %s66, %s69
      %p78 = scmp.eq.s32.totalorder %s21, 1
      %p79 = por %p77, %p78
      %p80 = scmp.ne.s32.totalorder %s69, %s70
      %p81 = scmp.eq.s32.totalorder %s21, 0
      %p82 = por %p80, %p81
      %p83 = scmp.ne.s32.totalorder %s69, %s70
      %p84 = scmp.eq.s32.totalorder %s22, 1
      %p85 = por %p83, %p84
      %p87 = scmp.ne.s32.totalorder %s70, %s86
      %p88 = scmp.eq.s32.totalorder %s22, 0
      %p89 = por %p87, %p88
      %s90 = ssub.s32 %s23, %s35
      %s91 = ssub.s32 %s24, %s31
      %s92 = sor.u32 %s90, %s91
      %p93 = scmp.eq.s32.totalorder %s92, 0
      %s95 = sadd.s32 %s94, 1
      %s96 = scalar_select %p93, %s94, %s95
      %p99 = pneg %p93
      %p100 = scmp.eq.s32.totalorder %s16, 1
      %p101 = por %p99, %p100
      %p102 = scmp.ne.s32.totalorder %s94, %s97
      %p103 = scmp.eq.s32.totalorder %s16, 0
      %p104 = por %p102, %p103
      %p105 = scmp.ne.s32.totalorder %s94, %s97
      %p106 = scmp.eq.s32.totalorder %s21, 1
      %p107 = por %p105, %p106
      %p108 = scmp.ne.s32.totalorder %s97, %s98
      %p109 = scmp.eq.s32.totalorder %s21, 0
      %p110 = por %p108, %p109
      %p111 = scmp.ne.s32.totalorder %s97, %s98
      %p112 = scmp.eq.s32.totalorder %s22, 1
      %p113 = por %p111, %p112
      %p115 = scmp.ne.s32.totalorder %s98, %s114
      %p116 = scmp.eq.s32.totalorder %s22, 0
      %p117 = por %p115, %p116
      %s119 = sadd.s32 %s118, 1
      %p122 = scmp.eq.s32.totalorder %s16, 1
      %p123 = scmp.ne.s32.totalorder %s118, %s120
      %p124 = scmp.eq.s32.totalorder %s16, 0
      %p125 = por %p123, %p124
      %p126 = scmp.ne.s32.totalorder %s118, %s120
      %p127 = scmp.eq.s32.totalorder %s21, 1
      %p128 = por %p126, %p127
      %p129 = scmp.ne.s32.totalorder %s120, %s121
      %p130 = scmp.eq.s32.totalorder %s21, 0
      %p131 = por %p129, %p130
      %p132 = scmp.ne.s32.totalorder %s120, %s121
      %p133 = scmp.eq.s32.totalorder %s22, 1
      %p134 = por %p132, %p133
      %p136 = scmp.ne.s32.totalorder %s121, %s135
      %p137 = scmp.eq.s32.totalorder %s22, 0
      %p138 = por %p136, %p137
      %s140 = sadd.s32 %s139, 1
      %p143 = scmp.eq.s32.totalorder %s16, 1
      %p144 = scmp.ne.s32.totalorder %s139, %s141
      %p145 = scmp.eq.s32.totalorder %s16, 0
      %p146 = por %p144, %p145
      %p147 = scmp.ne.s32.totalorder %s139, %s141
      %p148 = scmp.eq.s32.totalorder %s21, 1
      %p149 = por %p147, %p148
      %p150 = scmp.ne.s32.totalorder %s141, %s142
      %p151 = scmp.eq.s32.totalorder %s21, 0
      %p152 = por %p150, %p151
      %p153 = scmp.ne.s32.totalorder %s141, %s142
      %p154 = scmp.eq.s32.totalorder %s22, 1
      %p155 = por %p153, %p154
      %p157 = scmp.ne.s32.totalorder %s142, %s156
      %p158 = scmp.eq.s32.totalorder %s22, 0
      %p159 = por %p157, %p158
      %s160 = ssub.s32 %s23, %s35
      %s161 = ssub.s32 %s24, %s31
      %s162 = sor.u32 %s160, %s161
      %p163 = scmp.eq.s32.totalorder %s162, 0
      %s165 = sadd.s32 %s164, 1
      %s166 = scalar_select %p163, %s164, %s165
      %p169 = pneg %p163
      %p170 = scmp.eq.s32.totalorder %s16, 1
      %p171 = por %p169, %p170
      %p172 = scmp.ne.s32.totalorder %s164, %s167
      %p173 = scmp.eq.s32.totalorder %s16, 0
      %p174 = por %p172, %p173
      %p175 = scmp.ne.s32.totalorder %s164, %s167
      %p176 = scmp.eq.s32.totalorder %s21, 1
      %p177 = por %p175, %p176
      %p178 = scmp.ne.s32.totalorder %s167, %s168
      %p179 = scmp.eq.s32.totalorder %s21, 0
      %p180 = por %p178, %p179
      %p181 = scmp.ne.s32.totalorder %s167, %s168
      %p182 = scmp.eq.s32.totalorder %s22, 1
      %p183 = por %p181, %p182
      %p185 = scmp.ne.s32.totalorder %s168, %s184
      %p186 = scmp.eq.s32.totalorder %s22, 0
      %p187 = por %p185, %p186
      %s188 = ssub.s32 %s23, %s35
      %s189 = ssub.s32 %s24, %s31
      %s190 = sor.u32 %s188, %s189
      %p191 = scmp.eq.s32.totalorder %s190, 0
      %s193 = sadd.s32 %s192, 1
      %s194 = scalar_select %p191, %s192, %s193
      %p197 = pneg %p191
      %p198 = scmp.eq.s32.totalorder %s16, 1
      %p199 = por %p197, %p198
      %p200 = scmp.ne.s32.totalorder %s192, %s195
      %p201 = scmp.eq.s32.totalorder %s16, 0
      %p202 = por %p200, %p201
      %p203 = scmp.ne.s32.totalorder %s192, %s195
      %p204 = scmp.eq.s32.totalorder %s21, 1
      %p205 = por %p203, %p204
      %p206 = scmp.ne.s32.totalorder %s195, %s196
      %p207 = scmp.eq.s32.totalorder %s21, 0
      %p208 = por %p206, %p207
      %p209 = scmp.ne.s32.totalorder %s195, %s196
      %p210 = scmp.eq.s32.totalorder %s22, 1
      %p211 = por %p209, %p210
      %p213 = scmp.ne.s32.totalorder %s196, %s212
      %p214 = scmp.eq.s32.totalorder %s22, 0
      %p215 = por %p213, %p214
      %p216 = scmp.le.s32.totalorder 1, %s16
      %p217 = scmp.lt.s32.totalorder %s16, 3
      %p218 = pnand %p216, %p217
      %p219 = pneg %p218
      // Predicated region
      $region9: #{attention_forward.1} parent=5 // pred_check
        _
      $region10: #{attention_forward.1} parent=5 // pred_check_branch
        %221 = sbr.rel (%p218) target = $region12
      $region11: #{attention_forward.1} parent=5 // pred_region
        %s222 = ssub.s32 %s16, 1
        // Predicated region
        $region13: #{attention_forward.1} parent=11 // pred_check
          %p223 = pneg %p131
        $region14: #{attention_forward.1} parent=11 // pred_check_branch
          %225 = sbr.rel (%p223) target = $region16
        $region15: #{attention_forward.1} parent=11 // pred_region
          _
        $region16: #{attention_forward.1} parent=11 // pred_fallthru
          _
        // Predicated region
        $region17: #{attention_forward.1} parent=11 // pred_check
          %p226 = pneg %p152
        $region18: #{attention_forward.1} parent=11 // pred_check_branch
          %228 = sbr.rel (%p226) target = $region20
        $region19: #{attention_forward.1} parent=11 // pred_region
          _
        $region20: #{attention_forward.1} parent=11 // pred_fallthru
          _
      $region12: #{attention_forward.1} parent=5 // pred_fallthru
        _
      %p229 = scmp.lt.s32.totalorder %s16, 2
      // Predicated region
      $region21: #{attention_forward.1} parent=5 // pred_check
        %p230 = pneg %p229
      $region22: #{attention_forward.1} parent=5 // pred_check_branch
        %232 = sbr.rel (%p230) target = $region24
      $region23: #{attention_forward.1} parent=5 // pred_region
        // Predicated region
        $region25: #{attention_forward.1} parent=23 // pred_check
          %p233 = pneg %p50
        $region26: #{attention_forward.1} parent=23 // pred_check_branch
          %235 = sbr.rel (%p233) target = $region28
        $region27: #{attention_forward.1} parent=23 // pred_region
          %p236 = scmp.lt.s32.totalorder %s23, 1
          %s237 = scalar_select %p236, %s23, 1
          %p238 = scmp.lt.s32.totalorder %s24, 0
          %s239 = scalar_select %p238, %s24, 0
          %s240 = sadd.s32 %s239, %s237
          %s241 = smul.addr %s240, 8
          %s242 = scalar_lea.vmem %s0, %s241
        $region28: #{attention_forward.1} parent=23 // pred_fallthru
          _
        // Predicated region
        $region29: #{attention_forward.1} parent=23 // pred_check
          %p243 = pneg %p76
        $region30: #{attention_forward.1} parent=23 // pred_check_branch
          %245 = sbr.rel (%p243) target = $region32
        $region31: #{attention_forward.1} parent=23 // pred_region
          %p246 = scmp.lt.s32.totalorder %s23, 1
          %s247 = scalar_select %p246, %s23, 1
          %s248 = smul.addr %s247, 8
          %s249 = scalar_lea.vmem %s1, %s248
        $region32: #{attention_forward.1} parent=23 // pred_fallthru
          _
        // Predicated region
        $region33: #{attention_forward.1} parent=23 // pred_check
          %p250 = pneg %p104
        $region34: #{attention_forward.1} parent=23 // pred_check_branch
          %252 = sbr.rel (%p250) target = $region36
        $region35: #{attention_forward.1} parent=23 // pred_region
          %p253 = scmp.lt.s32.totalorder %s23, 1
          %s254 = scalar_select %p253, %s23, 1
          %p255 = scmp.lt.s32.totalorder %s24, 0
          %s256 = scalar_select %p255, %s24, 0
          %s257 = sadd.s32 %s256, %s254
          %s258 = smul.addr %s257, 2
          %s259 = scalar_lea.vmem %s2, %s258
        $region36: #{attention_forward.1} parent=23 // pred_fallthru
          _
      $region24: #{attention_forward.1} parent=5 // pred_fallthru
        _
      %p260 = scmp.le.s32.totalorder 1, %s16
      %p261 = scmp.lt.s32.totalorder %s16, 3
      %p262 = pnand %p260, %p261
      %p263 = pneg %p262
      // Predicated region
      $region37: #{attention_forward.1} parent=5 // pred_check
        _
      $region38: #{attention_forward.1} parent=5 // pred_check_branch
        %265 = sbr.rel (%p262) target = $region40
      $region39: #{attention_forward.1} parent=5 // pred_region
        %s266 = ssub.s32 %s16, 1
        %p267 = scmp.lt.s32.totalorder %s25, 1
        %s268 = scalar_select %p267, %s25, 1
        %p269 = scmp.lt.s32.totalorder %s26, 0
        %s270 = scalar_select %p269, %s26, 0
        %s271 = sadd.s32 %s270, %s268
        %s272 = smul.addr %s271, 8
        %s273 = scalar_lea.vmem %s0, %s272
        %p274 = pneg %p56
        %p275 = pneg %p53
        %p276 = scmp.lt.s32.totalorder %s25, 1
        %s277 = scalar_select %p276, %s25, 1
        %s278 = smul.addr %s277, 8
        %s279 = scalar_lea.vmem %s1, %s278
        %p280 = pneg %p82
        %p281 = pneg %p79
        %p282 = scmp.lt.s32.totalorder %s25, 1
        %s283 = scalar_select %p282, %s25, 1
        %p284 = scmp.lt.s32.totalorder %s26, 0
        %s285 = scalar_select %p284, %s26, 0
        %s286 = sadd.s32 %s285, %s283
        %s287 = smul.addr %s286, 2
        %s288 = scalar_lea.vmem %s2, %s287
        %p289 = pneg %p110
        %p290 = pneg %p107
        %p291 = pneg %p131
        %p292 = pneg %p128
        %p293 = pneg %p152
        %p294 = pneg %p149
        %p295 = pneg %p180
        %p296 = pneg %p177
        %p297 = scmp.lt.s32.totalorder %s25, 1
        %s298 = scalar_select %p297, %s25, 1
        %p299 = scmp.lt.s32.totalorder %s26, 0
        %s300 = scalar_select %p299, %s26, 0
        %s301 = sadd.s32 %s300, %s298
        %s302 = smul.addr %s301, 8
        %s303 = scalar_lea.vmem %s5, %s302
        %p304 = pneg %p208
        %p305 = pneg %p205
        %s306 = sand.u32 %s195, 1
        %s307 = scalar_lea.sflag [#allocation4], %s306
        %s308 = sand.u32 %s195, 1
        %s309 = smul.addr %s308, 8
        %s310 = scalar_lea.vmem [#allocation3], %s309
        %p311 = scmp.lt.s32.totalorder %s25, 1
        %s312 = scalar_select %p311, %s25, 1
        %p313 = scmp.lt.s32.totalorder %s26, 0
        %s314 = scalar_select %p313, %s26, 0
        %s315 = sadd.s32 %s314, %s312
        %s316 = smul.addr %s315, 8
        %s317 = scalar_lea.vmem %s0, %s316
        %p318 = scmp.lt.s32.totalorder %s25, 1
        %s319 = scalar_select %p318, %s25, 1
        %s320 = smul.addr %s319, 8
        %s321 = scalar_lea.vmem %s1, %s320
        %p322 = scmp.lt.s32.totalorder %s25, 1
        %s323 = scalar_select %p322, %s25, 1
        %p324 = scmp.lt.s32.totalorder %s26, 0
        %s325 = scalar_select %p324, %s26, 0
        %s326 = sadd.s32 %s325, %s323
        %s327 = smul.addr %s326, 2
        %s328 = scalar_lea.vmem %s2, %s327
        %p329 = scmp.lt.s32.totalorder %s25, 1
        %s330 = scalar_select %p329, %s25, 1
        %p331 = scmp.lt.s32.totalorder %s26, 0
        %s332 = scalar_select %p331, %s26, 0
        %s333 = sadd.s32 %s332, %s330
        %s334 = smul.addr %s333, 8
        %s335 = scalar_lea.vmem %s5, %s334
        %v336 = vld [vmem:[%s317] sm:$0xff]
        %v337 = vld [vmem:[%s321] sm:$0xff]
        %v338 = vld [vmem:[%s328] sm:$0x3]
        %v339 = vunpack.c.0.s8 %v338
        %v340 = vcvt.s32.f32 %v339
        %v341 = vmul.f32 %v340, -1e+30
        %vm342 = vcmask 261120
        %v344 = vsel %vm342, %v336, 0
        %v347 = vsel %vm342, %v337, 0
        %349 = vmatprep.subr.mxu0 0.0
        %350 = vmatpush1.xpose.msra.mxu0 0.0
        %351 = vmatprep.subr.mxu0 0.0
        %352 = vmatpush1.xpose.msra.mxu0 0.0
        %353 = vmatprep.subr.mxu0 0.0
        %354 = vmatpush1.xpose.msra.mxu0 0.0
        %355 = vmatprep.subr.mxu0 0.0
        %356 = vmatpush1.xpose.msra.mxu0 0.0
        %357 = vmatprep.subr.mxu0 0.0
        %358 = vmatpush1.xpose.msra.mxu0 0.0
        %359 = vmatprep.subr.mxu0 0.0
        %360 = vmatpush1.xpose.msra.mxu0 0.0
        %361 = vmatprep.subr.mxu0 0.0
        %362 = vmatpush1.xpose.msra.mxu0 0.0
        %363 = vmatprep.subr.mxu0 0.0
        %364 = vmatpush1.xpose.msra.mxu0 0.0
        %365 = vmatprep.subr.mxu0 0.0
        %366 = vmatpush1.xpose.msra.mxu0 0.0
        %367 = vmatprep.subr.mxu0 0.0
        %368 = vmatpush1.xpose.msra.mxu0 0.0
        %369 = vmatprep.subr.mxu0 0.0
        %370 = vmatpush1.xpose.msra.mxu0 0.0
        %371 = vmatprep.subr.mxu0 0.0
        %372 = vmatpush1.xpose.msra.mxu0 0.0
        %373 = vmatprep.subr.mxu0 0.0
        %374 = vmatpush1.xpose.msra.mxu0 0.0
        %375 = vmatprep.subr.mxu0 0.0
        %376 = vmatpush1.xpose.msra.mxu0 0.0
        %377 = vmatprep.subr.mxu0 0.0
        %378 = vmatpush1.xpose.msra.mxu0 0.0
        %379 = vmatprep.subr.mxu0 0.0
        %380 = vmatpush1.xpose.msra.mxu0 %v347
        %381 = vmatprep.subr.mxu0 0.0
        %382 = vmatpush2.xpose.msra.mxu0 0.0
        %383 = vmatprep.subr.mxu0 0.0
        %384 = vmatpush2.xpose.msra.mxu0 0.0
        %385 = vmatprep.subr.mxu0 0.0
        %386 = vmatpush2.xpose.msra.mxu0 0.0
        %387 = vmatprep.subr.mxu0 0.0
        %388 = vmatpush2.xpose.msra.mxu0 0.0
        %389 = vmatprep.subr.mxu0 0.0
        %390 = vmatpush2.xpose.msra.mxu0 0.0
        %391 = vmatprep.subr.mxu0 0.0
        %392 = vmatpush2.xpose.msra.mxu0 0.0
        %393 = vmatprep.subr.mxu0 0.0
        %394 = vmatpush2.xpose.msra.mxu0 0.0
        %395 = vmatprep.subr.mxu0 0.0
        %396 = vmatpush2.xpose.msra.mxu0 0.0
        %397 = vmatprep.subr.mxu0 0.0
        %398 = vmatpush2.xpose.msra.mxu0 0.0
        %399 = vmatprep.subr.mxu0 0.0
        %400 = vmatpush2.xpose.msra.mxu0 0.0
        %401 = vmatprep.subr.mxu0 0.0
        %402 = vmatpush2.xpose.msra.mxu0 0.0
        %403 = vmatprep.subr.mxu0 0.0
        %404 = vmatpush2.xpose.msra.mxu0 0.0
        %405 = vmatprep.subr.mxu0 0.0
        %406 = vmatpush2.xpose.msra.mxu0 0.0
        %407 = vmatprep.subr.mxu0 0.0
        %408 = vmatpush2.xpose.msra.mxu0 0.0
        %409 = vmatprep.subr.mxu0 0.0
        %410 = vmatpush2.xpose.msra.mxu0 0.0
        %411 = vmatprep.subr.mxu0 0.0
        %412 = vmatpush2.xpose.msra.mxu0 0.0
        %413 = vmatprep.mubr.f32.mxu0 0.0
        %414 = vmatmul.mubr.f32.gmra.mxu0 %v344
        %v415 = vpop.f32.mrf.mxu0
        %v416 = vadd.f32 %v341, %v415
        %v417 = vpop.f32.mrf.mxu0
        %418 = vdwg.mxu0
        %vm419 = vcmask 64512
        %v420 = vsel %vm419, %v416, -inf
        %421 = vmax.xlane.f32.xlu0 %v420
        %v422 = vpop.xlane.xlu0 %421
        %v423 = vsub.f32 %v416, %v422
        %v424 = vmul.f32 %v423, 1.442695
        %v425 = vpow.pop %v424
        %v426 = vsel %vm419, %v425, 0.0
        %427 = vadd.xlane.f32.xlu0 %v426
        %v428 = vpop.xlane.xlu0 %427
        %v429 = vrcp.pop %v428
        %v430 = vmul.f32 %v425, %v429
        %431 = vst.msk [vmem:[%s310] sm:$0xff] %vm419, %v430
        %v433 = vsel %vm419, %v430, 0
        %435 = vmatprep.subr.mxu0 0.0
        %436 = vmatpush1.msra.mxu0 0.0
        %437 = vmatprep.subr.mxu0 0.0
        %438 = vmatpush1.msra.mxu0 0.0
        %439 = vmatprep.subr.mxu0 0.0
        %440 = vmatpush1.msra.mxu0 0.0
        %441 = vmatprep.subr.mxu0 0.0
        %442 = vmatpush1.msra.mxu0 0.0
        %443 = vmatprep.subr.mxu0 0.0
        %444 = vmatpush1.msra.mxu0 0.0
        %445 = vmatprep.subr.mxu0 0.0
        %446 = vmatpush1.msra.mxu0 0.0
        %447 = vmatprep.subr.mxu0 0.0
        %448 = vmatpush1.msra.mxu0 0.0
        %449 = vmatprep.subr.mxu0 0.0
        %450 = vmatpush1.msra.mxu0 0.0
        %451 = vmatprep.subr.mxu0 0.0
        %452 = vmatpush1.msra.mxu0 0.0
        %453 = vmatprep.subr.mxu0 0.0
        %454 = vmatpush1.msra.mxu0 0.0
        %455 = vmatprep.subr.mxu0 0.0
        %456 = vmatpush1.msra.mxu0 0.0
        %457 = vmatprep.subr.mxu0 0.0
        %458 = vmatpush1.msra.mxu0 0.0
        %459 = vmatprep.subr.mxu0 0.0
        %460 = vmatpush1.msra.mxu0 0.0
        %461 = vmatprep.subr.mxu0 0.0
        %462 = vmatpush1.msra.mxu0 0.0
        %463 = vmatprep.subr.mxu0 0.0
        %464 = vmatpush1.msra.mxu0 0.0
        %465 = vmatprep.subr.mxu0 0.0
        %466 = vmatpush1.msra.mxu0 %v337
        %467 = vmatprep.subr.mxu0 0.0
        %468 = vmatpush2.msra.mxu0 0.0
        %469 = vmatprep.subr.mxu0 0.0
        %470 = vmatpush2.msra.mxu0 0.0
        %471 = vmatprep.subr.mxu0 0.0
        %472 = vmatpush2.msra.mxu0 0.0
        %473 = vmatprep.subr.mxu0 0.0
        %474 = vmatpush2.msra.mxu0 0.0
        %475 = vmatprep.subr.mxu0 0.0
        %476 = vmatpush2.msra.mxu0 0.0
        %477 = vmatprep.subr.mxu0 0.0
        %478 = vmatpush2.msra.mxu0 0.0
        %479 = vmatprep.subr.mxu0 0.0
        %480 = vmatpush2.msra.mxu0 0.0
        %481 = vmatprep.subr.mxu0 0.0
        %482 = vmatpush2.msra.mxu0 0.0
        %483 = vmatprep.subr.mxu0 0.0
        %484 = vmatpush2.msra.mxu0 0.0
        %485 = vmatprep.subr.mxu0 0.0
        %486 = vmatpush2.msra.mxu0 0.0
        %487 = vmatprep.subr.mxu0 0.0
        %488 = vmatpush2.msra.mxu0 0.0
        %489 = vmatprep.subr.mxu0 0.0
        %490 = vmatpush2.msra.mxu0 0.0
        %491 = vmatprep.subr.mxu0 0.0
        %492 = vmatpush2.msra.mxu0 0.0
        %493 = vmatprep.subr.mxu0 0.0
        %494 = vmatpush2.msra.mxu0 0.0
        %495 = vmatprep.subr.mxu0 0.0
        %496 = vmatpush2.msra.mxu0 0.0
        %497 = vmatprep.subr.mxu0 0.0
        %498 = vmatpush2.msra.mxu0 0.0
        %499 = vmatprep.mubr.f32.mxu0 0.0
        %500 = vmatmul.mubr.f32.gmra.mxu0 %v433
        %v501 = vpop.f32.mrf.mxu0
        %v502 = vadd.f32 0.0, %v501
        %v503 = vpop.f32.mrf.mxu0
        %504 = vdwg.mxu0
        %505 = vst.msk [vmem:[#allocation2] sm:$0xff] %vm342, %v502
        %506 = vrot.lane.b32.xlu0 %v336, 32
        %v507 = vpop.permute.xlu0 %506
        %vm509 = vcmask 523520
        %510 = vst.msk [vmem:[#allocation2] sm:$0xff] %vm509, %v507
        %v511 = vld [vmem:[#allocation2] sm:$0xff]
        %v512 = vld [vmem:[%s3] sm:$0xff]
        %v513 = vld [vmem:[%s3 + $0x8] sm:$0xff]
        %v514 = vld [vmem:[%s3 + $0x10] sm:$0xff]
        %v515 = vld [vmem:[%s3 + $0x18] sm:$0xff]
        %v516 = vld [vmem:[%s3 + $0x20] sm:$0xff]
        %v517 = vld [vmem:[%s3 + $0x28] sm:$0xff]
        %v518 = vld [vmem:[%s3 + $0x30] sm:$0xff]
        %v519 = vld [vmem:[%s3 + $0x38] sm:$0xff]
        %v520 = vld [vmem:[%s4] sm:$0x1]
        %v522 = vlaneseq
        %v523 = vshrl.u32 %v522, 7
        %v524 = vsub.s32 0, %v523
        %v525 = vrot.slane %v520, %v524
        %vm527 = vcmask 523264
        %v529 = vsel %vm527, %v511, 0
        %531 = vmatprep.subr.mxu0 0.0
        %532 = vmatpush1.msra.mxu0 0.0
        %533 = vmatprep.subr.mxu0 0.0
        %534 = vmatpush1.msra.mxu0 0.0
        %535 = vmatprep.subr.mxu0 0.0
        %536 = vmatpush1.msra.mxu0 0.0
        %537 = vmatprep.subr.mxu0 0.0
        %538 = vmatpush1.msra.mxu0 0.0
        %539 = vmatprep.subr.mxu0 0.0
        %540 = vmatpush1.msra.mxu0 0.0
        %541 = vmatprep.subr.mxu0 0.0
        %542 = vmatpush1.msra.mxu0 0.0
        %543 = vmatprep.subr.mxu0 0.0
        %544 = vmatpush1.msra.mxu0 0.0
        %545 = vmatprep.subr.mxu0 0.0
        %546 = vmatpush1.msra.mxu0 0.0
        %547 = vmatprep.subr.mxu0 0.0
        %548 = vmatpush1.msra.mxu0 %v519
        %549 = vmatprep.subr.mxu0 0.0
        %550 = vmatpush1.msra.mxu0 %v518
        %551 = vmatprep.subr.mxu0 0.0
        %552 = vmatpush1.msra.mxu0 %v517
        %553 = vmatprep.subr.mxu0 0.0
        %554 = vmatpush1.msra.mxu0 %v516
        %555 = vmatprep.subr.mxu0 0.0
        %556 = vmatpush1.msra.mxu0 %v515
        %557 = vmatprep.subr.mxu0 0.0
        %558 = vmatpush1.msra.mxu0 %v514
        %559 = vmatprep.subr.mxu0 0.0
        %560 = vmatpush1.msra.mxu0 %v513
        %561 = vmatprep.subr.mxu0 0.0
        %562 = vmatpush1.msra.mxu0 %v512
        %563 = vmatprep.subr.mxu0 0.0
        %564 = vmatpush2.msra.mxu0 0.0
        %565 = vmatprep.subr.mxu0 0.0
        %566 = vmatpush2.msra.mxu0 0.0
        %567 = vmatprep.subr.mxu0 0.0
        %568 = vmatpush2.msra.mxu0 0.0
        %569 = vmatprep.subr.mxu0 0.0
        %570 = vmatpush2.msra.mxu0 0.0
        %571 = vmatprep.subr.mxu0 0.0
        %572 = vmatpush2.msra.mxu0 0.0
        %573 = vmatprep.subr.mxu0 0.0
        %574 = vmatpush2.msra.mxu0 0.0
        %575 = vmatprep.subr.mxu0 0.0
        %576 = vmatpush2.msra.mxu0 0.0
        %577 = vmatprep.subr.mxu0 0.0
        %578 = vmatpush2.msra.mxu0 0.0
        %579 = vmatprep.subr.mxu0 0.0
        %580 = vmatpush2.msra.mxu0 0.0
        %581 = vmatprep.subr.mxu0 0.0
        %582 = vmatpush2.msra.mxu0 0.0
        %583 = vmatprep.subr.mxu0 0.0
        %584 = vmatpush2.msra.mxu0 0.0
        %585 = vmatprep.subr.mxu0 0.0
        %586 = vmatpush2.msra.mxu0 0.0
        %587 = vmatprep.subr.mxu0 0.0
        %588 = vmatpush2.msra.mxu0 0.0
        %589 = vmatprep.subr.mxu0 0.0
        %590 = vmatpush2.msra.mxu0 0.0
        %591 = vmatprep.subr.mxu0 0.0
        %592 = vmatpush2.msra.mxu0 0.0
        %593 = vmatprep.subr.mxu0 0.0
        %594 = vmatpush2.msra.mxu0 0.0
        %595 = vmatprep.mubr.f32.mxu0 0.0
        %596 = vmatmul.mubr.f32.gmra.mxu0 %v529
        %v597 = vpop.f32.mrf.mxu0
        %v598 = vadd.f32 %v525, %v597
        %v599 = vpop.f32.mrf.mxu0
        %600 = vdwg.mxu0
        %v601 = vtanh.pop %v598
        %602 = vst.msk [vmem:[%s335] sm:$0xff] %vm342, %v601
        %p603 = scmp.lt.s32.totalorder %s25, 1
        %s604 = scalar_select %p603, %s25, 1
        %p605 = scmp.lt.s32.totalorder %s26, 0
        %s606 = scalar_select %p605, %s26, 0
        %s607 = sadd.s32 %s606, %s604
        %s608 = smul.addr %s607, 8
        %s609 = scalar_lea.vmem %s5, %s608
        %s610 = sand.u32 %s195, 1
        %s611 = scalar_lea.sflag [#allocation4], %s610
        %s612 = sand.u32 %s195, 1
        %s613 = smul.addr %s612, 8
        %s614 = scalar_lea.vmem [#allocation3], %s613
        // Predicated region
        $region41: #{attention_forward.1} parent=39 // pred_check
          %p615 = pneg %p177
        $region42: #{attention_forward.1} parent=39 // pred_check_branch
          %617 = sbr.rel (%p615) target = $region44
        $region43: #{attention_forward.1} parent=39 // pred_region
          _
        $region44: #{attention_forward.1} parent=39 // pred_fallthru
          _
        // Predicated region
        $region45: #{attention_forward.1} parent=39 // pred_check
          %p618 = pneg %p205
        $region46: #{attention_forward.1} parent=39 // pred_check_branch
          %620 = sbr.rel (%p618) target = $region48
        $region47: #{attention_forward.1} parent=39 // pred_region
          %s622 = ssub.s32 128, 128
          %623 = vsyncadd %s611, %s622
          %s624 = sadd.s32 %s26, %s25
          %s625 = smul.addr %s624, 128
          %s626 = scalar_lea.hbm %s6, %s625
          %s628 = sshll.u32 %s614, 4
          %s629 = int_to_ptr.vmem [resolvable:$true] %s628
          %631 = dma.vmem_to_hbm [thread:$0]  %s629, 128, %s626, %s611
        $region48: #{attention_forward.1} parent=39 // pred_fallthru
          _
      $region40: #{attention_forward.1} parent=5 // pred_fallthru
        _
      %p632 = scmp.le.s32.totalorder 2, %s16
      // Predicated region
      $region49: #{attention_forward.1} parent=5 // pred_check
        %p633 = pneg %p632
      $region50: #{attention_forward.1} parent=5 // pred_check_branch
        %635 = sbr.rel (%p633) target = $region52
      $region51: #{attention_forward.1} parent=5 // pred_region
        %s636 = ssub.s32 %s16, 2
        // Predicated region
        $region53: #{attention_forward.1} parent=51 // pred_check
          %p637 = pneg %p183
        $region54: #{attention_forward.1} parent=51 // pred_check_branch
          %639 = sbr.rel (%p637) target = $region56
        $region55: #{attention_forward.1} parent=51 // pred_region
          %p640 = scmp.lt.s32.totalorder %s27, 1
          %s641 = scalar_select %p640, %s27, 1
          %p642 = scmp.lt.s32.totalorder %s28, 0
          %s643 = scalar_select %p642, %s28, 0
          %s644 = sadd.s32 %s643, %s641
          %s645 = smul.addr %s644, 8
          %s646 = scalar_lea.vmem %s5, %s645
        $region56: #{attention_forward.1} parent=51 // pred_fallthru
          _
        // Predicated region
        $region57: #{attention_forward.1} parent=51 // pred_check
          %p647 = pneg %p211
        $region58: #{attention_forward.1} parent=51 // pred_check_branch
          %649 = sbr.rel (%p647) target = $region60
        $region59: #{attention_forward.1} parent=51 // pred_region
          %s650 = sand.u32 %s196, 1
          %s651 = scalar_lea.sflag [#allocation4], %s650
          %s652 = sand.u32 %s196, 1
          %s653 = smul.addr %s652, 8
          %s654 = scalar_lea.vmem [#allocation3], %s653
          %655 = dma.done %s651, 128
        $region60: #{attention_forward.1} parent=51 // pred_fallthru
          _
      $region52: #{attention_forward.1} parent=5 // pred_fallthru
        _
    $region6: #{attention_forward.1} parent=1 // loop_footer
      %s20 = sadd.s32 1, %s16
    $region7: #{attention_forward.1} parent=1 // loop_footer_branch
      %15 = sbr.rel target = $region3
    $region8: #{attention_forward.1} parent=1 // loop_exit
      _
    %656 = vsyncpa [#allocation4], 1
    %s657 = scalar_lea.sflag [#allocation4], 1
    %658 = vsyncpa %s657, 1

</llo_original>
